<compile_context>
chip_gen: v7x
topology: tpu7x:2x2x1
jax: 0.10.0
libtpu: 0.0.40
codegen_flags: <defaults>
</compile_context>

<pallas_src>
import math

import jax
import jax.numpy as jnp
from jax.experimental import pallas as pl
from jax.experimental.pallas import tpu as pltpu

NBITS = 4
QN = -(2 ** (NBITS - 1))   # -8
QP = 2 ** (NBITS - 1) - 1  # 7


def _actq_kernel(x_ref, alpha_ref, zp_ref, o_ref):
    # x_ref:     (tile_r, tile_l) tile of the (N*C, H*W)-flattened activation
    # alpha_ref: (tile_r, 1) per-row (= per (n, c)) scale, broadcast over lanes
    # zp_ref:    (tile_r, 1) per-row zero point (already STE-rounded)
    x = x_ref[...]
    alpha = alpha_ref[...]
    zp = zp_ref[...]
    q = jnp.round(jnp.clip(x / alpha + zp, float(QN), float(QP)))
    o_ref[...] = ((q - zp) * alpha).astype(o_ref.dtype)


def _choose_tiles(R, L, itemsize, target_bytes):
    """Pick (tile_r, tile_l): ~target_bytes per block, layout-legal
    (second-last dim multiple of 8 or == R, last dim multiple of 128 or == L)."""
    if L * itemsize > target_bytes:
        # A group of 8 rows already exceeds the budget -> also tile the lane axis.
        tile_r = min(R, 8)
        tile_l = max(128, (target_bytes // (tile_r * itemsize)) // 128 * 128)
    else:
        tile_l = L
        rows = target_bytes // (L * itemsize)
        if rows >= R:
            tile_r = R
        else:
            tile_r = max(8, (rows // 8) * 8)
    return tile_r, tile_l


def actq_forward(x_nchw, alpha, zero_point, *, target_block_bytes=2 << 20):
    """ActQ forward. x_nchw: (N, C, H, W) float32; alpha, zero_point: (C,) float32."""
    N, C, H, W = x_nchw.shape
    R, L = N * C, H * W

    # Pure metadata reshape of the row-major NCHW tensor: no HBM traffic.
    x_flat = x_nchw.reshape(R, L)

    # Tiny (R, 1) per-row parameter columns; row r = n*C + c -> channel c = r % C.
    alpha_col = jnp.broadcast_to(
        alpha.astype(jnp.float32)[None, :], (N, C)).reshape(R, 1)
    zp_col = jnp.broadcast_to(
        jnp.round(zero_point).astype(jnp.float32)[None, :], (N, C)).reshape(R, 1)
    # grad_scale() only changes gradients; forward values of alpha/zp are unchanged.

    tile_r, tile_l = _choose_tiles(R, L, x_flat.dtype.itemsize, target_block_bytes)
    grid = (pl.cdiv(R, tile_r), pl.cdiv(L, tile_l))

    out_flat = pl.pallas_call(
        _actq_kernel,
        out_shape=jax.ShapeDtypeStruct((R, L), x_flat.dtype),
        grid_spec=pltpu.PrefetchScalarGridSpec(
            num_scalar_prefetch=0,
            grid=grid,
            in_specs=[
                pl.BlockSpec((tile_r, tile_l), lambda i, j: (i, j)),
                pl.BlockSpec((tile_r, 1), lambda i, j: (i, 0)),
                pl.BlockSpec((tile_r, 1), lambda i, j: (i, 0)),
            ],
            out_specs=pl.BlockSpec((tile_r, tile_l), lambda i, j: (i, j)),
        ),
        compiler_params=pltpu.CompilerParams(
            dimension_semantics=("parallel", "parallel"),
            vmem_limit_bytes=32 << 20,
        ),
    )(x_flat, alpha_col, zp_col)

    return out_flat.reshape(N, C, H, W)


def actq_init_params(x_nchw, C):
    """Deterministic parameter init, mirroring the module's first-training-step init:
       alpha       <- 2 * mean|x| / sqrt(Qp)               (scalar broadcast to C)
       zero_point  <- 0.9*0 + 0.1*(min(x) - alpha*Qn)      (scalar broadcast to C)
    """
    alpha_s = 2.0 * jnp.mean(jnp.abs(x_nchw)) / math.sqrt(QP)
    zp_s = 0.1 * (jnp.min(x_nchw) - alpha_s * QN)
    alpha = jnp.full((C,), alpha_s, dtype=jnp.float32)
    zero_point = jnp.full((C,), zp_s, dtype=jnp.float32)
    return alpha, zero_point


def actq_reference(x_nchw, alpha, zero_point):
    """Pure-JAX reference of the PyTorch forward (for verification)."""
    a = alpha.reshape(1, -1, 1, 1)
    zp = jnp.round(zero_point).reshape(1, -1, 1, 1)
    q = jnp.round(jnp.clip(x_nchw / a + zp, QN, QP))
    return (q - zp) * a


# TODO(synk): training-time pieces (grad_scale / round_pass straight-through gradients
# and the stateful first-batch init_state update) are autograd/bookkeeping, not kernel
# work; only the forward quantization is implemented in Pallas.

if __name__ == "__main__":
    key = jax.random.PRNGKey(0)
    N, C, H, W = 2, 4, 16, 16
    x = jax.random.normal(key, (N, C, H, W), dtype=jnp.float32)

    alpha, zero_point = actq_init_params(x, C)

    out = actq_forward(x, alpha, zero_point)
    out = jax.block_until_ready(out)

    ref = actq_reference(x, alpha, zero_point)
    assert out.shape == x.shape and out.dtype == x.dtype
    assert jnp.allclose(out, ref, atol=1e-5, rtol=1e-5)

    print("KERNEL_OK")
</pallas_src>

<mosaic_0001>
module attributes {stable_mosaic.version = 11 : i64} {
  func.func @_actq_kernel(%arg0: i32, %arg1: i32, %arg2: memref<8x256xf32, #tpu.memory_space<vmem>>, %arg3: memref<8x1xf32, #tpu.memory_space<vmem>>, %arg4: memref<8x1xf32, #tpu.memory_space<vmem>>, %arg5: memref<8x256xf32, #tpu.memory_space<vmem>>) attributes {dimension_semantics = [#tpu.dimension_semantics<parallel>, #tpu.dimension_semantics<parallel>], iteration_bounds = array<i64: 1, 1>, scalar_prefetch = 0 : i64, scratch_operands = 0 : i64, tpu.core_type = #tpu.core_type<tc>, window_params = [{transform_indices = @transform_0, window_bounds = array<i64: 8, 256>}, {transform_indices = @transform_1, window_bounds = array<i64: 8, 1>}, {transform_indices = @transform_2, window_bounds = array<i64: 8, 1>}, {transform_indices = @transform_3, window_bounds = array<i64: 8, 256>}]} {
    %c0 = arith.constant 0 : index
    %c0_0 = arith.constant 0 : index
    %0 = vector.load %arg2[%c0, %c0_0] : memref<8x256xf32, #tpu.memory_space<vmem>>, vector<8x256xf32>
    %c0_1 = arith.constant 0 : index
    %c0_2 = arith.constant 0 : index
    %1 = vector.load %arg3[%c0_1, %c0_2] : memref<8x1xf32, #tpu.memory_space<vmem>>, vector<8x1xf32>
    %c0_3 = arith.constant 0 : index
    %c0_4 = arith.constant 0 : index
    %2 = vector.load %arg4[%c0_3, %c0_4] : memref<8x1xf32, #tpu.memory_space<vmem>>, vector<8x1xf32>
    %3 = vector.broadcast %1 : vector<8x1xf32> to vector<8x256xf32>
    %4 = arith.divf %0, %3 : vector<8x256xf32>
    %5 = vector.broadcast %2 : vector<8x1xf32> to vector<8x256xf32>
    %6 = arith.addf %4, %5 : vector<8x256xf32>
    %cst = arith.constant -8.000000e+00 : f32
    %cst_5 = arith.constant 7.000000e+00 : f32
    %7 = vector.broadcast %cst : f32 to vector<8x256xf32>
    %8 = arith.maximumf %7, %6 : vector<8x256xf32>
    %9 = vector.broadcast %cst_5 : f32 to vector<8x256xf32>
    %10 = arith.minimumf %9, %8 : vector<8x256xf32>
    %11 = math.roundeven %10 : vector<8x256xf32>
    %12 = vector.broadcast %2 : vector<8x1xf32> to vector<8x256xf32>
    %13 = arith.subf %11, %12 : vector<8x256xf32>
    %14 = vector.broadcast %1 : vector<8x1xf32> to vector<8x256xf32>
    %15 = arith.mulf %13, %14 : vector<8x256xf32>
    %c0_6 = arith.constant 0 : index
    %c0_7 = arith.constant 0 : index
    %16 = vector.load %arg5[%c0_6, %c0_7] : memref<8x256xf32, #tpu.memory_space<vmem>>, vector<8x256xf32>
    tpu.vector_store %arg5[%c0_6, %c0_7], %15 {strides = array<i32>} : memref<8x256xf32, #tpu.memory_space<vmem>>, vector<8x256xf32>,
    return
  }
  func.func @transform_0(%arg0: i32, %arg1: i32) -> (i32, i32) {
    %c0_i32 = arith.constant 0 : i32
    return %arg0, %arg1 : i32, i32
  }
  func.func @transform_1(%arg0: i32, %arg1: i32) -> (i32, i32) {
    %c0_i32 = arith.constant 0 : i32
    %c0_i32_0 = arith.constant 0 : i32
    return %arg0, %c0_i32 : i32, i32
  }
  func.func @transform_2(%arg0: i32, %arg1: i32) -> (i32, i32) {
    %c0_i32 = arith.constant 0 : i32
    %c0_i32_0 = arith.constant 0 : i32
    return %arg0, %c0_i32 : i32, i32
  }
  func.func @transform_3(%arg0: i32, %arg1: i32) -> (i32, i32) {
    %c0_i32 = arith.constant 0 : i32
    return %arg0, %arg1 : i32, i32
  }
}

</mosaic_0001>

<llo_original>
// kernel: tpu_custom_call.1
$region0: #{tpu_custom_call.1}
  #allocation0 [shape = 'u32[]', space=smem, size = 0x4, offset = 0x4, fixed_abs, tag = 'smem constant byte address 0x4 - core index']
  #allocation1 [shape = 'u32[144,128]{1,0:T(1,128)}', space=vmem, size = 0x12000, scoped, tag = 'internal scratch']
  %s0 = inlined_call_operand.vmem [shape: f32[8,256], index: 0, kind: input, shape index: {}]
  %s1 = inlined_call_operand.vmem [shape: f32[8,1], index: 1, kind: input, shape index: {}]
  %s2 = inlined_call_operand.vmem [shape: f32[8,1], index: 2, kind: input, shape index: {}]
  %s3 = inlined_call_operand.hbm [shape: f32[8,256], index: 3, kind: output, shape index: {}]
  %s4 = sld [smem:[#allocation0]]
  $region22: #{tpu_custom_call.1} parent=0
    _
  %s6 = ssub.s32 1, %s4
  %s7 = scalar_select 0, %s6, %s4
  $region1: #{tpu_custom_call.1} parent=0
    #allocation2 [shape = 'u8[8192]{0}', space=vmem, size = 0x2000, scoped, tag = 'output window, operand 0, single buffered']
    #allocation3 [shape = 's32[1]{0}', space=sflag, size = 0x4, scoped, tag = 'scoped memory for tpu_custom_call.1']
    %8 = vsyncpa [#allocation3], 0
    // Predicated region
    $region2: #{tpu_custom_call.1} parent=1 // pred_check
      _
    $region3: #{tpu_custom_call.1} parent=1 // pred_check_branch
      %10 = sbr.rel (0) target = $region5
    $region4: #{tpu_custom_call.1} parent=1 // pred_region
      _
    $region5: #{tpu_custom_call.1} parent=1 // pred_fallthru
      _
    // Predicated region
    $region6: #{tpu_custom_call.1} parent=1 // pred_check
      _
    $region7: #{tpu_custom_call.1} parent=1 // pred_check_branch
      %12 = sbr.rel (0) target = $region9
    $region8: #{tpu_custom_call.1} parent=1 // pred_region
      _
    $region9: #{tpu_custom_call.1} parent=1 // pred_fallthru
      _
    // Predicated region
    $region10: #{tpu_custom_call.1} parent=1 // pred_check
      _
    $region11: #{tpu_custom_call.1} parent=1 // pred_check_branch
      %14 = sbr.rel (0) target = $region13
    $region12: #{tpu_custom_call.1} parent=1 // pred_region
      _
    $region13: #{tpu_custom_call.1} parent=1 // pred_fallthru
      _
    %v15 = vld [vmem:[%s0] sm:$0xff]
    %v16 = vld [vmem:[%s0 + $0x8] sm:$0xff]
    %v17 = vld [vmem:[%s1] sm:$0xff]
    %v18 = vld [vmem:[%s2] sm:$0xff]
    %20 = vset.pattern.permute.xlu0 0
    %21 = vperm.xlu0 %20, %v17
    %v22 = vpop.permute.xlu0 %21
    %v24 = vrcp.pop %v22
    %v25 = vmul.f32 %v15, %v24
    %v26 = vmul.f32 %v16, %v24
    %28 = vset.pattern.permute.xlu0 0
    %29 = vperm.xlu0 %28, %v18
    %v30 = vpop.permute.xlu0 %29
    %v32 = vadd.f32 %v25, %v30
    %v33 = vadd.f32 %v26, %v30
    %v34 = vmax.f32 %v32, -8.0
    %v35 = vmax.f32 %v33, -8.0
    %v36 = vmin.f32 %v34, 7.0
    %v37 = vmin.f32 %v35, 7.0
    %v38 = vround.ne.pseudo %v36
    %v39 = vround.ne.pseudo %v37
    %v40 = vsub.f32 %v38, %v30
    %v41 = vsub.f32 %v39, %v30
    %v42 = vmul.f32 %v40, %v22
    %v43 = vmul.f32 %v41, %v22
    %44 = vst [vmem:[#allocation2] sm:$0xff] %v42
    %45 = vst [vmem:[#allocation2 + $0x8] sm:$0xff] %v43
    // Predicated region
    $region14: #{tpu_custom_call.1} parent=1 // pred_check
      _
    $region15: #{tpu_custom_call.1} parent=1 // pred_check_branch
      %47 = sbr.rel (0) target = $region17
    $region16: #{tpu_custom_call.1} parent=1 // pred_region
      %s49 = ssub.s32 256, 256
      %50 = vsyncadd [#allocation3], %s49
      %s52 = sshll.u32 [#allocation2], 4
      %s53 = int_to_ptr.vmem [resolvable:$true] %s52
      %55 = dma.vmem_to_hbm [thread:$0]  %s53, 256, %s3, [#allocation3]
    $region17: #{tpu_custom_call.1} parent=1 // pred_fallthru
      _
    // Predicated region
    $region18: #{tpu_custom_call.1} parent=1 // pred_check
      _
    $region19: #{tpu_custom_call.1} parent=1 // pred_check_branch
      %57 = sbr.rel (0) target = $region21
    $region20: #{tpu_custom_call.1} parent=1 // pred_region
      %58 = dma.done [#allocation3], 256
    $region21: #{tpu_custom_call.1} parent=1 // pred_fallthru
      _
    %59 = vsyncpa [#allocation3], 1

</llo_original>
